<compile_context>
chip_gen: v6e
topology: v6e:2x2x1
jax: 0.10.0
libtpu: 0.0.40
codegen_flags: <defaults>
</compile_context>

<pallas_src>
import jax
import jax.numpy as jnp
from jax.experimental import pallas as pl
from jax.experimental.pallas import tpu as pltpu


def _round_up(x, m):
    return (x + m - 1) // m * m


def _residual_mlp_kernel(x_ref, w1_ref, b1_ref, w2_ref, b2_ref, o_ref, acc_ref):
    # x_ref : (tm, Dp)      w1_ref: (Dp, th)   b1_ref: (1, th)
    # w2_ref: (th, Dp)      b2_ref: (1, Dp)    o_ref : (tm, Dp)
    # acc_ref: (tm, Dp) f32 scratch, accumulated over the H grid axis.
    k = pl.program_id(1)
    x = x_ref[...]

    # First matmul + bias + GELU on this H-block (GELU is elementwise along H,
    # so blocking H is exact).
    h = jnp.dot(x, w1_ref[...], preferred_element_type=jnp.float32) + b1_ref[...]
    h = jax.nn.gelu(h, approximate=True)  # pinned: tanh approximation (EUP)

    partial = jnp.dot(
        h.astype(w2_ref.dtype), w2_ref[...], preferred_element_type=jnp.float32
    )

    @pl.when(k == 0)
    def _():
        acc_ref[...] = jnp.zeros_like(acc_ref)

    acc_ref[...] += partial

    @pl.when(k == pl.num_programs(1) - 1)
    def _():
        # Residual add fn(x) + x; x promotes to f32 in the add (no extra copy).
        o_ref[...] = (acc_ref[...] + b2_ref[...] + x).astype(o_ref.dtype)


def residual_mlp(x, w1, b1, w2, b2, *, tm=256, th=512):
    """x: (B, S, D) -> (B, S, D) computing GELU-MLP(x) + x with one fused kernel."""
    B, S, D = x.shape
    H = w1.shape[1]
    M = B * S
    dtype = x.dtype
    itemsize = jnp.dtype(dtype).itemsize

    # dtype-aware sublane multiple: 8 for 32-bit, 16 for bf16 (packed sublanes).
    sub = 16 if dtype == jnp.bfloat16 else 8

    # Lane-dense padding of the feature dims (multiples of 128).
    Dp = _round_up(D, 128)
    th = max(128, _round_up(min(th, _round_up(H, 128)), 128))
    Hp = _round_up(H, th)

    # Row tile: as large as possible up to `tm`, clamped for small M.
    tm = max(sub, min(_round_up(tm, sub), _round_up(M, sub)))
    Mp = _round_up(M, tm)

    # Pad operands (zero padding is exact: padded H/D columns contribute 0).
    x2 = x.reshape(M, D)
    if (Mp, Dp) != (M, D):
        x2 = jnp.pad(x2, ((0, Mp - M), (0, Dp - D)))
    w1p = jnp.pad(w1, ((0, Dp - D), (0, Hp - H))) if (Dp, Hp) != (D, H) else w1
    w2p = jnp.pad(w2, ((0, Hp - H), (0, Dp - D))) if (Hp, Dp) != (H, D) else w2
    b1p = jnp.pad(b1.reshape(1, H), ((0, 0), (0, Hp - H)))
    b2p = jnp.pad(b2.reshape(1, D), ((0, 0), (0, Dp - D)))

    # Explicit VMEM budget: double-buffered inputs + output + f32 accumulator.
    vmem_needed = (
        2 * (tm * Dp + Dp * th + th + th * Dp + Dp) * itemsize   # inputs (2 bufs)
        + 2 * tm * Dp * itemsize                                 # output (2 bufs)
        + tm * Dp * 4                                            # acc scratch
    )
    vmem_limit = int(min(64 * 2**20, max(32 * 2**20, int(vmem_needed * 1.5))))

    cost = pl.CostEstimate(
        flops=4 * Mp * Dp * Hp,                 # two matmuls
        transcendentals=Mp * Hp,                # GELU
        bytes_accessed=(Mp * Dp * 2 + Dp * Hp + Hp + Hp * Dp + Dp) * itemsize,
    )

    grid = (Mp // tm, Hp // th)

    out = pl.pallas_call(
        _residual_mlp_kernel,
        out_shape=jax.ShapeDtypeStruct((Mp, Dp), dtype),
        grid_spec=pltpu.PrefetchScalarGridSpec(
            num_scalar_prefetch=0,
            grid=grid,
            in_specs=[
                pl.BlockSpec((tm, Dp), lambda i, k: (i, 0)),   # x rows (resident over H)
                pl.BlockSpec((Dp, th), lambda i, k: (0, k)),   # w1 H-block
                pl.BlockSpec((1, th), lambda i, k: (0, k)),    # b1 H-block
                pl.BlockSpec((th, Dp), lambda i, k: (k, 0)),   # w2 H-block
                pl.BlockSpec((1, Dp), lambda i, k: (0, 0)),    # b2 (resident)
            ],
            out_specs=pl.BlockSpec((tm, Dp), lambda i, k: (i, 0)),
            scratch_shapes=[pltpu.VMEM((tm, Dp), jnp.float32)],
        ),
        compiler_params=pltpu.CompilerParams(
            dimension_semantics=("parallel", "arbitrary"),
            vmem_limit_bytes=vmem_limit,
        ),
        cost_estimate=cost,
    )(x2, w1p, b1p, w2p, b2p)

    return out[:M, :D].reshape(B, S, D)


def reference(x, w1, b1, w2, b2):
    h = jax.nn.gelu(x @ w1 + b1, approximate=True)
    return (h @ w2 + b2) + x


if __name__ == "__main__":
    key = jax.random.PRNGKey(0)

    # ---- Test 1: lane-aligned shapes (D multiple of 128), 2 H-blocks ----
    B, S, D, H = 2, 16, 128, 256
    k_x, k_w1, k_b1, k_w2, k_b2, key = jax.random.split(key, 6)
    x = jax.random.normal(k_x, (B, S, D), dtype=jnp.float32)
    w1 = jax.random.normal(k_w1, (D, H), dtype=jnp.float32) * 0.05
    b1 = jax.random.normal(k_b1, (H,), dtype=jnp.float32) * 0.01
    w2 = jax.random.normal(k_w2, (H, D), dtype=jnp.float32) * 0.05
    b2 = jax.random.normal(k_b2, (D,), dtype=jnp.float32) * 0.01

    out = jax.block_until_ready(residual_mlp(x, w1, b1, w2, b2, th=128))
    ref = reference(x, w1, b1, w2, b2)
    assert out.shape == (B, S, D)
    assert jnp.allclose(out, ref, atol=1e-4, rtol=1e-4), "mismatch vs reference (aligned)"

    # ---- Test 2: ragged / unaligned shapes exercise the padding path ----
    B2, S2, D2, H2 = 2, 7, 96, 160
    k_x, k_w1, k_b1, k_w2, k_b2, key = jax.random.split(key, 6)
    x2 = jax.random.normal(k_x, (B2, S2, D2), dtype=jnp.float32)
    w1b = jax.random.normal(k_w1, (D2, H2), dtype=jnp.float32) * 0.05
    b1b = jax.random.normal(k_b1, (H2,), dtype=jnp.float32) * 0.01
    w2b = jax.random.normal(k_w2, (H2, D2), dtype=jnp.float32) * 0.05
    b2b = jax.random.normal(k_b2, (D2,), dtype=jnp.float32) * 0.01

    out2 = jax.block_until_ready(residual_mlp(x2, w1b, b1b, w2b, b2b, th=128))
    ref2 = reference(x2, w1b, b1b, w2b, b2b)
    assert out2.shape == (B2, S2, D2)
    assert jnp.allclose(out2, ref2, atol=1e-4, rtol=1e-4), "mismatch vs reference (ragged)"

    print("KERNEL_OK")
</pallas_src>

<mosaic_0001>
module attributes {stable_mosaic.version = 11 : i64} {
  func.func @_residual_mlp_kernel(%arg0: i32, %arg1: i32, %arg2: memref<32x128xf32, #tpu.memory_space<vmem>>, %arg3: memref<128x128xf32, #tpu.memory_space<vmem>>, %arg4: memref<1x128xf32, #tpu.memory_space<vmem>>, %arg5: memref<128x128xf32, #tpu.memory_space<vmem>>, %arg6: memref<1x128xf32, #tpu.memory_space<vmem>>, %arg7: memref<32x128xf32, #tpu.memory_space<vmem>>, %arg8: memref<32x128xf32, #tpu.memory_space<vmem>>) attributes {dimension_semantics = [#tpu.dimension_semantics<parallel>, #tpu.dimension_semantics<arbitrary>], iteration_bounds = array<i64: 1, 2>, scalar_prefetch = 0 : i64, scratch_operands = 1 : i64, tpu.core_type = #tpu.core_type<tc>, window_params = [{transform_indices = @transform_0, window_bounds = array<i64: 32, 128>}, {transform_indices = @transform_1, window_bounds = array<i64: 128, 128>}, {transform_indices = @transform_2, window_bounds = array<i64: 1, 128>}, {transform_indices = @transform_3, window_bounds = array<i64: 128, 128>}, {pipeline_mode = #tpu.pipeline_mode<synchronous>, transform_indices = @transform_4, window_bounds = array<i64: 1, 128>}, {transform_indices = @transform_5, window_bounds = array<i64: 32, 128>}]} {
    %c0 = arith.constant 0 : index
    %c0_0 = arith.constant 0 : index
    %0 = vector.load %arg2[%c0, %c0_0] : memref<32x128xf32, #tpu.memory_space<vmem>>, vector<32x128xf32>
    %c0_1 = arith.constant 0 : index
    %c0_2 = arith.constant 0 : index
    %1 = vector.load %arg3[%c0_1, %c0_2] : memref<128x128xf32, #tpu.memory_space<vmem>>, vector<128x128xf32>
    %cst = arith.constant dense<0.000000e+00> : vector<32x128xf32>
    %2 = tpu.matmul %0, %1, %cst {dimension_numbers = #tpu.dot_dimension_numbers<[1], [0], [0], [1], [0, 0, 1, 1], [], []>} : vector<32x128xf32>, vector<128x128xf32>, vector<32x128xf32> -> vector<32x128xf32>
    %c0_3 = arith.constant 0 : index
    %c0_4 = arith.constant 0 : index
    %3 = vector.load %arg4[%c0_3, %c0_4] : memref<1x128xf32, #tpu.memory_space<vmem>>, vector<1x128xf32>
    %4 = vector.broadcast %3 : vector<1x128xf32> to vector<32x128xf32>
    %5 = arith.addf %2, %4 : vector<32x128xf32>
    %6 = arith.mulf %5, %5 : vector<32x128xf32>
    %7 = arith.mulf %5, %6 : vector<32x128xf32>
    %cst_5 = arith.constant 4.471500e-02 : f32
    %8 = vector.broadcast %cst_5 : f32 to vector<32x128xf32>
    %9 = arith.mulf %8, %7 : vector<32x128xf32>
    %10 = arith.addf %5, %9 : vector<32x128xf32>
    %cst_6 = arith.constant 0.797884583 : f32
    %11 = vector.broadcast %cst_6 : f32 to vector<32x128xf32>
    %12 = arith.mulf %11, %10 : vector<32x128xf32>
    %13 = math.tanh %12 : vector<32x128xf32>
    %cst_7 = arith.constant 1.000000e+00 : f32
    %14 = vector.broadcast %cst_7 : f32 to vector<32x128xf32>
    %15 = arith.addf %14, %13 : vector<32x128xf32>
    %cst_8 = arith.constant 5.000000e-01 : f32
    %16 = vector.broadcast %cst_8 : f32 to vector<32x128xf32>
    %17 = arith.mulf %16, %15 : vector<32x128xf32>
    %18 = arith.mulf %5, %17 : vector<32x128xf32>
    %c0_9 = arith.constant 0 : index
    %c0_10 = arith.constant 0 : index
    %19 = vector.load %arg5[%c0_9, %c0_10] : memref<128x128xf32, #tpu.memory_space<vmem>>, vector<128x128xf32>
    %cst_11 = arith.constant dense<0.000000e+00> : vector<32x128xf32>
    %20 = tpu.matmul %18, %19, %cst_11 {dimension_numbers = #tpu.dot_dimension_numbers<[1], [0], [0], [1], [0, 0, 1, 1], [], []>} : vector<32x128xf32>, vector<128x128xf32>, vector<32x128xf32> -> vector<32x128xf32>
    %c0_i32 = arith.constant 0 : i32
    %21 = arith.cmpi eq, %arg1, %c0_i32 : i32
    %22 = arith.extui %21 : i1 to i32
    %c0_i32_12 = arith.constant 0 : i32
    %23 = arith.cmpi ne, %22, %c0_i32_12 : i32
    scf.if %23 {
      %cst_18 = arith.constant 0.000000e+00 : f32
      %30 = vector.broadcast %cst_18 : f32 to vector<32x128xf32>
      %c0_19 = arith.constant 0 : index
      %c0_20 = arith.constant 0 : index
      %31 = vector.load %arg8[%c0_19, %c0_20] : memref<32x128xf32, #tpu.memory_space<vmem>>, vector<32x128xf32>
      tpu.vector_store %arg8[%c0_19, %c0_20], %30 {strides = array<i32>} : memref<32x128xf32, #tpu.memory_space<vmem>>, vector<32x128xf32>,
    } else {
    }
    %c0_13 = arith.constant 0 : index
    %c0_14 = arith.constant 0 : index
    %24 = vector.load %arg8[%c0_13, %c0_14] : memref<32x128xf32, #tpu.memory_space<vmem>>, vector<32x128xf32>
    %25 = arith.addf %24, %20 : vector<32x128xf32>
    %c0_15 = arith.constant 0 : index
    %c0_16 = arith.constant 0 : index
    %26 = vector.load %arg8[%c0_15, %c0_16] : memref<32x128xf32, #tpu.memory_space<vmem>>, vector<32x128xf32>
    tpu.vector_store %arg8[%c0_15, %c0_16], %25 {strides = array<i32>} : memref<32x128xf32, #tpu.memory_space<vmem>>, vector<32x128xf32>,
    %c1_i32 = arith.constant 1 : i32
    %27 = arith.cmpi eq, %arg1, %c1_i32 : i32
    %28 = arith.extui %27 : i1 to i32
    %c0_i32_17 = arith.constant 0 : i32
    %29 = arith.cmpi ne, %28, %c0_i32_17 : i32
    scf.if %29 {
      %c0_18 = arith.constant 0 : index
      %c0_19 = arith.constant 0 : index
      %30 = vector.load %arg8[%c0_18, %c0_19] : memref<32x128xf32, #tpu.memory_space<vmem>>, vector<32x128xf32>
      %c0_20 = arith.constant 0 : index
      %c0_21 = arith.constant 0 : index
      %31 = vector.load %arg6[%c0_20, %c0_21] : memref<1x128xf32, #tpu.memory_space<vmem>>, vector<1x128xf32>
      %32 = vector.broadcast %31 : vector<1x128xf32> to vector<32x128xf32>
      %33 = arith.addf %30, %32 : vector<32x128xf32>
      %34 = arith.addf %33, %0 : vector<32x128xf32>
      %c0_22 = arith.constant 0 : index
      %c0_23 = arith.constant 0 : index
      %35 = vector.load %arg7[%c0_22, %c0_23] : memref<32x128xf32, #tpu.memory_space<vmem>>, vector<32x128xf32>
      tpu.vector_store %arg7[%c0_22, %c0_23], %34 {strides = array<i32>} : memref<32x128xf32, #tpu.memory_space<vmem>>, vector<32x128xf32>,
    } else {
    }
    return
  }
  func.func @transform_0(%arg0: i32, %arg1: i32) -> (i32, i32) {
    %c0_i32 = arith.constant 0 : i32
    %c0_i32_0 = arith.constant 0 : i32
    return %arg0, %c0_i32 : i32, i32
  }
  func.func @transform_1(%arg0: i32, %arg1: i32) -> (i32, i32) {
    %c0_i32 = arith.constant 0 : i32
    %c0_i32_0 = arith.constant 0 : i32
    return %c0_i32, %arg1 : i32, i32
  }
  func.func @transform_2(%arg0: i32, %arg1: i32) -> (i32, i32) {
    %c0_i32 = arith.constant 0 : i32
    %c0_i32_0 = arith.constant 0 : i32
    return %c0_i32, %arg1 : i32, i32
  }
  func.func @transform_3(%arg0: i32, %arg1: i32) -> (i32, i32) {
    %c0_i32 = arith.constant 0 : i32
    %c0_i32_0 = arith.constant 0 : i32
    return %arg1, %c0_i32 : i32, i32
  }
  func.func @transform_4(%arg0: i32, %arg1: i32) -> (i32, i32) {
    %c0_i32 = arith.constant 0 : i32
    %c0_i32_0 = arith.constant 0 : i32
    %c0_i32_1 = arith.constant 0 : i32
    return %c0_i32, %c0_i32_0 : i32, i32
  }
  func.func @transform_5(%arg0: i32, %arg1: i32) -> (i32, i32) {
    %c0_i32 = arith.constant 0 : i32
    %c0_i32_0 = arith.constant 0 : i32
    return %arg0, %c0_i32 : i32, i32
  }
}

</mosaic_0001>

<llo_original>
// kernel: tpu_custom_call.1
$region0: #{tpu_custom_call.1}
  #allocation0 [shape = 'u32[]', space=smem, size = 0x4, offset = 0x4, fixed_abs, tag = 'smem constant byte address 0x4 - core index']
  #allocation1 [shape = 'u32[144,128]{1,0:T(1,128)}', space=vmem, size = 0x12000, scoped, tag = 'internal scratch']
  #allocation2 [shape = 'f32[32,128]{1,0:T(8,128)}', space=vmem, size = 0x4000, scoped, tag = 'scratch operand']
  %s0 = inlined_call_operand.hbm [shape: f32[32,128], index: 0, kind: input, shape index: {}]
  %s1 = inlined_call_operand.hbm [shape: f32[128,256], index: 1, kind: input, shape index: {}]
  %s2 = inlined_call_operand.vmem [shape: f32[1,256], index: 2, kind: input, shape index: {}]
  %s3 = inlined_call_operand.hbm [shape: f32[256,128], index: 3, kind: input, shape index: {}]
  %s4 = inlined_call_operand.vmem [shape: f32[1,128], index: 4, kind: input, shape index: {}]
  %s5 = inlined_call_operand.hbm [shape: f32[32,128], index: 5, kind: output, shape index: {}]
  %s6 = sld [smem:[#allocation0]]
  $region73: #{tpu_custom_call.1} parent=0
    _
  %s8 = ssub.s32 1, %s6
  %s9 = scalar_select 0, %s8, %s6
  $region1: #{tpu_custom_call.1} parent=0
    #allocation3 [shape = 'u8[16384]{0}', space=vmem, size = 0x4000, scoped, tag = 'input window, operand 0, single buffered']
    #allocation4 [shape = 's32[2]{0}', space=sflag, size = 0x8, scoped, tag = 'scoped memory for tpu_custom_call.1']
    #allocation5 [shape = 's32[2]{0}', space=sflag, size = 0x8, scoped, tag = 'scoped memory for tpu_custom_call.1']
    #allocation6 [shape = 'u8[131072]{0}', space=vmem, size = 0x20000, scoped, tag = 'input window, operand 1']
    #allocation7 [shape = 's32[2]{0}', space=sflag, size = 0x8, scoped, tag = 'scoped memory for tpu_custom_call.1']
    #allocation8 [shape = 'u8[131072]{0}', space=vmem, size = 0x20000, scoped, tag = 'input window, operand 3']
    #allocation9 [shape = 'u8[16384]{0}', space=vmem, size = 0x4000, scoped, tag = 'output window, operand 0, single buffered']
    %10 = vsyncpa [#allocation4], 0
    %11 = vsyncpa [#allocation7], 0
    %s12 = scalar_lea.sflag [#allocation7], 1
    %13 = vsyncpa %s12, 0
    %14 = vsyncpa [#allocation5], 0
    loop: start=0, step=1, limit=4
    $region2: #{tpu_custom_call.1} parent=1 // loop_pre_header
      _
    $region3: #{tpu_custom_call.1} parent=1 // loop_header
      %s16 = sphi 0, %s20
      %p17 = scmp.ge.s32.totalorder %s16, 4
      %s23 = sphi 0, %s35
      %s24 = sphi 0, %s31
      %s25 = sphi 0, %s23
      %s26 = sphi 0, %s24
      %s27 = sphi 0, %s25
      %s28 = sphi 0, %s26
      %s38 = sphi 0, %s40
      %s41 = sphi 0, %s38
      %s42 = sphi 0, %s41
      %s58 = sphi 0, %s42
      %s64 = sphi 0, %s66
      %s67 = sphi 0, %s64
      %s68 = sphi 0, %s67
      %s84 = sphi 0, %s68
      %s90 = sphi 0, %s92
      %s93 = sphi 0, %s90
      %s94 = sphi 0, %s93
      %s110 = sphi 0, %s94
      %s116 = sphi 0, %s118
      %s119 = sphi 0, %s116
      %s120 = sphi 0, %s119
      %s136 = sphi 0, %s120
      %s140 = sphi 0, %s140
      %s142 = sphi 0, %s140
      %s143 = sphi 0, %s142
      %s157 = sphi 0, %s143
      %s163 = sphi 0, %s165
      %s166 = sphi 0, %s163
      %s167 = sphi 0, %s166
      %s183 = sphi 0, %s167
    $region4: #{tpu_custom_call.1} parent=1 // loop_header_branch
      %19 = sbr.rel (%p17) target = $region8
    $region5: #{tpu_custom_call.1} parent=1 // loop_body
      %s21 = ssub.s32 %s16, 1
      %s22 = ssub.s32 %s16, 2
      %s29 = sadd.s32 1, %s24
      %p30 = scmp.ge.s32.totalorder %s29, 2
      %s31 = scalar_select %p30, 0, %s29
      %s32 = sadd.s32 1, %s23
      %s33 = scalar_select %p30, %s32, %s23
      %p34 = scmp.ge.s32.totalorder %s33, 1
      %s35 = scalar_select %p34, 0, %s33
      %s36 = ssub.s32 %s23, %s35
      %p37 = scmp.eq.s32.totalorder %s36, 0
      %s39 = sadd.s32 %s38, 1
      %s40 = scalar_select %p37, %s38, %s39
      %p43 = pneg %p37
      %p44 = scmp.eq.s32.totalorder %s16, 1
      %p45 = por %p43, %p44
      %p46 = scmp.ne.s32.totalorder %s38, %s41
      %p47 = scmp.eq.s32.totalorder %s16, 0
      %p48 = por %p46, %p47
      %p49 = scmp.ne.s32.totalorder %s38, %s41
      %p50 = scmp.eq.s32.totalorder %s21, 1
      %p51 = por %p49, %p50
      %p52 = scmp.ne.s32.totalorder %s41, %s42
      %p53 = scmp.eq.s32.totalorder %s21, 0
      %p54 = por %p52, %p53
      %p55 = scmp.ne.s32.totalorder %s41, %s42
      %p56 = scmp.eq.s32.totalorder %s22, 1
      %p57 = por %p55, %p56
      %p59 = scmp.ne.s32.totalorder %s42, %s58
      %p60 = scmp.eq.s32.totalorder %s22, 0
      %p61 = por %p59, %p60
      %s62 = ssub.s32 %s24, %s31
      %p63 = scmp.eq.s32.totalorder %s62, 0
      %s65 = sadd.s32 %s64, 1
      %s66 = scalar_select %p63, %s64, %s65
      %p69 = pneg %p63
      %p70 = scmp.eq.s32.totalorder %s16, 1
      %p71 = por %p69, %p70
      %p72 = scmp.ne.s32.totalorder %s64, %s67
      %p73 = scmp.eq.s32.totalorder %s16, 0
      %p74 = por %p72, %p73
      %p75 = scmp.ne.s32.totalorder %s64, %s67
      %p76 = scmp.eq.s32.totalorder %s21, 1
      %p77 = por %p75, %p76
      %p78 = scmp.ne.s32.totalorder %s67, %s68
      %p79 = scmp.eq.s32.totalorder %s21, 0
      %p80 = por %p78, %p79
      %p81 = scmp.ne.s32.totalorder %s67, %s68
      %p82 = scmp.eq.s32.totalorder %s22, 1
      %p83 = por %p81, %p82
      %p85 = scmp.ne.s32.totalorder %s68, %s84
      %p86 = scmp.eq.s32.totalorder %s22, 0
      %p87 = por %p85, %p86
      %s88 = ssub.s32 %s24, %s31
      %p89 = scmp.eq.s32.totalorder %s88, 0
      %s91 = sadd.s32 %s90, 1
      %s92 = scalar_select %p89, %s90, %s91
      %p95 = pneg %p89
      %p96 = scmp.eq.s32.totalorder %s16, 1
      %p97 = por %p95, %p96
      %p98 = scmp.ne.s32.totalorder %s90, %s93
      %p99 = scmp.eq.s32.totalorder %s16, 0
      %p100 = por %p98, %p99
      %p101 = scmp.ne.s32.totalorder %s90, %s93
      %p102 = scmp.eq.s32.totalorder %s21, 1
      %p103 = por %p101, %p102
      %p104 = scmp.ne.s32.totalorder %s93, %s94
      %p105 = scmp.eq.s32.totalorder %s21, 0
      %p106 = por %p104, %p105
      %p107 = scmp.ne.s32.totalorder %s93, %s94
      %p108 = scmp.eq.s32.totalorder %s22, 1
      %p109 = por %p107, %p108
      %p111 = scmp.ne.s32.totalorder %s94, %s110
      %p112 = scmp.eq.s32.totalorder %s22, 0
      %p113 = por %p111, %p112
      %s114 = ssub.s32 %s24, %s31
      %p115 = scmp.eq.s32.totalorder %s114, 0
      %s117 = sadd.s32 %s116, 1
      %s118 = scalar_select %p115, %s116, %s117
      %p121 = pneg %p115
      %p122 = scmp.eq.s32.totalorder %s16, 1
      %p123 = por %p121, %p122
      %p124 = scmp.ne.s32.totalorder %s116, %s119
      %p125 = scmp.eq.s32.totalorder %s16, 0
      %p126 = por %p124, %p125
      %p127 = scmp.ne.s32.totalorder %s116, %s119
      %p128 = scmp.eq.s32.totalorder %s21, 1
      %p129 = por %p127, %p128
      %p130 = scmp.ne.s32.totalorder %s119, %s120
      %p131 = scmp.eq.s32.totalorder %s21, 0
      %p132 = por %p130, %p131
      %p133 = scmp.ne.s32.totalorder %s119, %s120
      %p134 = scmp.eq.s32.totalorder %s22, 1
      %p135 = por %p133, %p134
      %p137 = scmp.ne.s32.totalorder %s120, %s136
      %p138 = scmp.eq.s32.totalorder %s22, 0
      %p139 = por %p137, %p138
      %s141 = sadd.s32 %s140, 1
      %p144 = scmp.eq.s32.totalorder %s16, 1
      %p145 = scmp.ne.s32.totalorder %s140, %s142
      %p146 = scmp.eq.s32.totalorder %s16, 0
      %p147 = por %p145, %p146
      %p148 = scmp.ne.s32.totalorder %s140, %s142
      %p149 = scmp.eq.s32.totalorder %s21, 1
      %p150 = por %p148, %p149
      %p151 = scmp.ne.s32.totalorder %s142, %s143
      %p152 = scmp.eq.s32.totalorder %s21, 0
      %p153 = por %p151, %p152
      %p154 = scmp.ne.s32.totalorder %s142, %s143
      %p155 = scmp.eq.s32.totalorder %s22, 1
      %p156 = por %p154, %p155
      %p158 = scmp.ne.s32.totalorder %s143, %s157
      %p159 = scmp.eq.s32.totalorder %s22, 0
      %p160 = por %p158, %p159
      %s161 = ssub.s32 %s23, %s35
      %p162 = scmp.eq.s32.totalorder %s161, 0
      %s164 = sadd.s32 %s163, 1
      %s165 = scalar_select %p162, %s163, %s164
      %p168 = pneg %p162
      %p169 = scmp.eq.s32.totalorder %s16, 1
      %p170 = por %p168, %p169
      %p171 = scmp.ne.s32.totalorder %s163, %s166
      %p172 = scmp.eq.s32.totalorder %s16, 0
      %p173 = por %p171, %p172
      %p174 = scmp.ne.s32.totalorder %s163, %s166
      %p175 = scmp.eq.s32.totalorder %s21, 1
      %p176 = por %p174, %p175
      %p177 = scmp.ne.s32.totalorder %s166, %s167
      %p178 = scmp.eq.s32.totalorder %s21, 0
      %p179 = por %p177, %p178
      %p180 = scmp.ne.s32.totalorder %s166, %s167
      %p181 = scmp.eq.s32.totalorder %s22, 1
      %p182 = por %p180, %p181
      %p184 = scmp.ne.s32.totalorder %s167, %s183
      %p185 = scmp.eq.s32.totalorder %s22, 0
      %p186 = por %p184, %p185
      %p187 = scmp.le.s32.totalorder 1, %s16
      %p188 = scmp.lt.s32.totalorder %s16, 3
      %p189 = pnand %p187, %p188
      %p190 = pneg %p189
      // Predicated region
      $region9: #{tpu_custom_call.1} parent=5 // pred_check
        _
      $region10: #{tpu_custom_call.1} parent=5 // pred_check_branch
        %192 = sbr.rel (%p189) target = $region12
      $region11: #{tpu_custom_call.1} parent=5 // pred_region
        %s193 = ssub.s32 %s16, 1
        // Predicated region
        $region13: #{tpu_custom_call.1} parent=11 // pred_check
          %p194 = pneg %p54
        $region14: #{tpu_custom_call.1} parent=11 // pred_check_branch
          %196 = sbr.rel (%p194) target = $region16
        $region15: #{tpu_custom_call.1} parent=11 // pred_region
          %s197 = smul.u32 4, %s25
          %s199 = ssub.s32 512, 512
          %200 = vsyncadd [#allocation4], %s199
          %s201 = smul.addr %s197, 128
          %s202 = scalar_lea.hbm %s0, %s201
          %s203 = sshll.u32 [#allocation3], 4
          %s204 = int_to_ptr.vmem [resolvable:$true] %s203
          %209 = dma.hbm_to_vmem [thread:$0]  %s202, 512, %s204, [#allocation4], 128, 128, 8
        $region16: #{tpu_custom_call.1} parent=11 // pred_fallthru
          _
        // Predicated region
        $region17: #{tpu_custom_call.1} parent=11 // pred_check
          %p210 = pneg %p153
        $region18: #{tpu_custom_call.1} parent=11 // pred_check_branch
          %212 = sbr.rel (%p210) target = $region20
        $region19: #{tpu_custom_call.1} parent=11 // pred_region
          _
        $region20: #{tpu_custom_call.1} parent=11 // pred_fallthru
          _
      $region12: #{tpu_custom_call.1} parent=5 // pred_fallthru
        _
      %p213 = scmp.lt.s32.totalorder %s16, 2
      // Predicated region
      $region21: #{tpu_custom_call.1} parent=5 // pred_check
        %p214 = pneg %p213
      $region22: #{tpu_custom_call.1} parent=5 // pred_check_branch
        %216 = sbr.rel (%p214) target = $region24
      $region23: #{tpu_custom_call.1} parent=5 // pred_region
        // Predicated region
        $region25: #{tpu_custom_call.1} parent=23 // pred_check
          %p217 = pneg %p74
        $region26: #{tpu_custom_call.1} parent=23 // pred_check_branch
          %219 = sbr.rel (%p217) target = $region28
        $region27: #{tpu_custom_call.1} parent=23 // pred_region
          %s220 = sand.u32 %s16, 1
          %s221 = scalar_lea.sflag [#allocation7], %s220
          %s222 = sand.u32 %s64, 1
          %s223 = smul.addr %s222, 128
          %s224 = scalar_lea.vmem [#allocation6], %s223
          %s226 = ssub.s32 2048, 2048
          %227 = vsyncadd %s221, %s226
          %s228 = smul.addr %s24, 128
          %s229 = scalar_lea.hbm %s1, %s228
          %s230 = sshll.u32 %s224, 4
          %s231 = int_to_ptr.vmem [resolvable:$true] %s230
          %236 = dma.hbm_to_vmem [thread:$0]  %s229, 2048, %s231, %s221, 256, 128, 8
        $region28: #{tpu_custom_call.1} parent=23 // pred_fallthru
          _
        // Predicated region
        $region29: #{tpu_custom_call.1} parent=23 // pred_check
          %p237 = pneg %p100
        $region30: #{tpu_custom_call.1} parent=23 // pred_check_branch
          %239 = sbr.rel (%p237) target = $region32
        $region31: #{tpu_custom_call.1} parent=23 // pred_region
          %p240 = scmp.lt.s32.totalorder %s24, 1
          %s241 = scalar_select %p240, %s24, 1
          %s242 = scalar_lea.vmem %s2, %s241
        $region32: #{tpu_custom_call.1} parent=23 // pred_fallthru
          _
        // Predicated region
        $region33: #{tpu_custom_call.1} parent=23 // pred_check
          %p243 = pneg %p126
        $region34: #{tpu_custom_call.1} parent=23 // pred_check_branch
          %245 = sbr.rel (%p243) target = $region36
        $region35: #{tpu_custom_call.1} parent=23 // pred_region
          %s246 = sand.u32 %s16, 1
          %s247 = scalar_lea.sflag [#allocation7], %s246
          %s248 = sand.u32 %s116, 1
          %s249 = smul.addr %s248, 128
          %s250 = scalar_lea.vmem [#allocation8], %s249
          %s251 = smul.u32 16, %s24
          %s253 = ssub.s32 2048, 2048
          %254 = vsyncadd %s247, %s253
          %s255 = smul.addr %s251, 128
          %s256 = scalar_lea.hbm %s3, %s255
          %s257 = sshll.u32 %s250, 4
          %s258 = int_to_ptr.vmem [resolvable:$true] %s257
          %263 = dma.hbm_to_vmem [thread:$0]  %s256, 2048, %s258, %s247, 128, 128, 8
        $region36: #{tpu_custom_call.1} parent=23 // pred_fallthru
          _
      $region24: #{tpu_custom_call.1} parent=5 // pred_fallthru
        _
      %p264 = scmp.le.s32.totalorder 1, %s16
      %p265 = scmp.lt.s32.totalorder %s16, 3
      %p266 = pnand %p264, %p265
      %p267 = pneg %p266
      // Predicated region
      $region37: #{tpu_custom_call.1} parent=5 // pred_check
        _
      $region38: #{tpu_custom_call.1} parent=5 // pred_check_branch
        %269 = sbr.rel (%p266) target = $region40
      $region39: #{tpu_custom_call.1} parent=5 // pred_region
        %s270 = ssub.s32 %s16, 1
        // Predicated region
        $region41: #{tpu_custom_call.1} parent=39 // pred_check
          %p271 = pneg %p54
        $region42: #{tpu_custom_call.1} parent=39 // pred_check_branch
          %273 = sbr.rel (%p271) target = $region44
        $region43: #{tpu_custom_call.1} parent=39 // pred_region
          %274 = dma.done [#allocation4], 512
        $region44: #{tpu_custom_call.1} parent=39 // pred_fallthru
          _
        %s275 = sand.u32 %s21, 1
        %s276 = scalar_lea.sflag [#allocation7], %s275
        %s277 = sand.u32 %s67, 1
        %s278 = smul.addr %s277, 128
        %s279 = scalar_lea.vmem [#allocation6], %s278
        // Predicated region
        $region45: #{tpu_custom_call.1} parent=39 // pred_check
          %p280 = pneg %p80
        $region46: #{tpu_custom_call.1} parent=39 // pred_check_branch
          %282 = sbr.rel (%p280) target = $region48
        $region47: #{tpu_custom_call.1} parent=39 // pred_region
          %283 = dma.done %s276, 2048
        $region48: #{tpu_custom_call.1} parent=39 // pred_fallthru
          _
        %s284 = sand.u32 %s21, 1
        %s285 = scalar_lea.sflag [#allocation7], %s284
        %s286 = sand.u32 %s119, 1
        %s287 = smul.addr %s286, 128
        %s288 = scalar_lea.vmem [#allocation8], %s287
        // Predicated region
        $region49: #{tpu_custom_call.1} parent=39 // pred_check
          %p289 = pneg %p132
        $region50: #{tpu_custom_call.1} parent=39 // pred_check_branch
          %291 = sbr.rel (%p289) target = $region52
        $region51: #{tpu_custom_call.1} parent=39 // pred_region
          %292 = dma.done %s285, 2048
        $region52: #{tpu_custom_call.1} parent=39 // pred_fallthru
          _
        %p293 = pneg %p54
        %p294 = pneg %p51
        %s295 = sand.u32 %s21, 1
        %s296 = scalar_lea.sflag [#allocation7], %s295
        %s297 = sand.u32 %s67, 1
        %s298 = smul.addr %s297, 128
        %s299 = scalar_lea.vmem [#allocation6], %s298
        %p300 = pneg %p80
        %p301 = pneg %p77
        %p302 = scmp.lt.s32.totalorder %s26, 1
        %s303 = scalar_select %p302, %s26, 1
        %s304 = scalar_lea.vmem %s2, %s303
        %p305 = pneg %p106
        %p306 = pneg %p103
        %s307 = sand.u32 %s21, 1
        %s308 = scalar_lea.sflag [#allocation7], %s307
        %s309 = sand.u32 %s119, 1
        %s310 = smul.addr %s309, 128
        %s311 = scalar_lea.vmem [#allocation8], %s310
        %p312 = pneg %p132
        %p313 = pneg %p129
        %p314 = pneg %p153
        %p315 = pneg %p150
        %p316 = pneg %p179
        %p317 = pneg %p176
        %s318 = smul.u32 4, %s25
        %p319 = scmp.lt.s32.totalorder %s26, 1
        %s320 = scalar_select %p319, %s26, 1
        %s321 = scalar_lea.vmem %s2, %s320
        %s322 = smul.u32 16, %s26
        %s323 = smul.u32 4, %s25
        %v324 = vld [vmem:[#allocation3] sm:$0xff]
        %v325 = vld [vmem:[#allocation3 + $0x8] sm:$0xff]
        %v326 = vld [vmem:[#allocation3 + $0x10] sm:$0xff]
        %v327 = vld [vmem:[#allocation3 + $0x18] sm:$0xff]
        %v328 = vld [vmem:[%s279] sm:$0xff]
        %v329 = vld [vmem:[%s279 + $0x8] sm:$0xff]
        %v330 = vld [vmem:[%s279 + $0x10] sm:$0xff]
        %v331 = vld [vmem:[%s279 + $0x18] sm:$0xff]
        %v332 = vld [vmem:[%s279 + $0x20] sm:$0xff]
        %v333 = vld [vmem:[%s279 + $0x28] sm:$0xff]
        %v334 = vld [vmem:[%s279 + $0x30] sm:$0xff]
        %v335 = vld [vmem:[%s279 + $0x38] sm:$0xff]
        %v336 = vld [vmem:[%s279 + $0x40] sm:$0xff]
        %v337 = vld [vmem:[%s279 + $0x48] sm:$0xff]
        %v338 = vld [vmem:[%s279 + $0x50] sm:$0xff]
        %v339 = vld [vmem:[%s279 + $0x58] sm:$0xff]
        %v340 = vld [vmem:[%s279 + $0x60] sm:$0xff]
        %v341 = vld [vmem:[%s279 + $0x68] sm:$0xff]
        %v342 = vld [vmem:[%s279 + $0x70] sm:$0xff]
        %v343 = vld [vmem:[%s279 + $0x78] sm:$0xff]
        %v344 = vld [vmem:[%s321] sm:$0x1]
        %v346 = vlaneseq
        %v347 = vshrl.u32 %v346, 7
        %v348 = vsub.s32 0, %v347
        %v349 = vrot.slane %v344, %v348
        %351 = vmatprep.subr.mxu0 0.0
        %352 = vmatpush1.msra.mxu0 %v343
        %353 = vmatprep.subr.mxu0 0.0
        %354 = vmatpush1.msra.mxu0 %v342
        %355 = vmatprep.subr.mxu0 0.0
        %356 = vmatpush1.msra.mxu0 %v341
        %357 = vmatprep.subr.mxu0 0.0
        %358 = vmatpush1.msra.mxu0 %v340
        %359 = vmatprep.subr.mxu0 0.0
        %360 = vmatpush1.msra.mxu0 %v339
        %361 = vmatprep.subr.mxu0 0.0
        %362 = vmatpush1.msra.mxu0 %v338
        %363 = vmatprep.subr.mxu0 0.0
        %364 = vmatpush1.msra.mxu0 %v337
        %365 = vmatprep.subr.mxu0 0.0
        %366 = vmatpush1.msra.mxu0 %v336
        %367 = vmatprep.subr.mxu0 0.0
        %368 = vmatpush1.msra.mxu0 %v335
        %369 = vmatprep.subr.mxu0 0.0
        %370 = vmatpush1.msra.mxu0 %v334
        %371 = vmatprep.subr.mxu0 0.0
        %372 = vmatpush1.msra.mxu0 %v333
        %373 = vmatprep.subr.mxu0 0.0
        %374 = vmatpush1.msra.mxu0 %v332
        %375 = vmatprep.subr.mxu0 0.0
        %376 = vmatpush1.msra.mxu0 %v331
        %377 = vmatprep.subr.mxu0 0.0
        %378 = vmatpush1.msra.mxu0 %v330
        %379 = vmatprep.subr.mxu0 0.0
        %380 = vmatpush1.msra.mxu0 %v329
        %381 = vmatprep.subr.mxu0 0.0
        %382 = vmatpush1.msra.mxu0 %v328
        %383 = vmatprep.subr.mxu0 0.0
        %384 = vmatpush2.msra.mxu0 0.0
        %385 = vmatprep.subr.mxu0 0.0
        %386 = vmatpush2.msra.mxu0 0.0
        %387 = vmatprep.subr.mxu0 0.0
        %388 = vmatpush2.msra.mxu0 0.0
        %389 = vmatprep.subr.mxu0 0.0
        %390 = vmatpush2.msra.mxu0 0.0
        %391 = vmatprep.subr.mxu0 0.0
        %392 = vmatpush2.msra.mxu0 0.0
        %393 = vmatprep.subr.mxu0 0.0
        %394 = vmatpush2.msra.mxu0 0.0
        %395 = vmatprep.subr.mxu0 0.0
        %396 = vmatpush2.msra.mxu0 0.0
        %397 = vmatprep.subr.mxu0 0.0
        %398 = vmatpush2.msra.mxu0 0.0
        %399 = vmatprep.subr.mxu0 0.0
        %400 = vmatpush2.msra.mxu0 0.0
        %401 = vmatprep.subr.mxu0 0.0
        %402 = vmatpush2.msra.mxu0 0.0
        %403 = vmatprep.subr.mxu0 0.0
        %404 = vmatpush2.msra.mxu0 0.0
        %405 = vmatprep.subr.mxu0 0.0
        %406 = vmatpush2.msra.mxu0 0.0
        %407 = vmatprep.subr.mxu0 0.0
        %408 = vmatpush2.msra.mxu0 0.0
        %409 = vmatprep.subr.mxu0 0.0
        %410 = vmatpush2.msra.mxu0 0.0
        %411 = vmatprep.subr.mxu0 0.0
        %412 = vmatpush2.msra.mxu0 0.0
        %413 = vmatprep.subr.mxu0 0.0
        %414 = vmatpush2.msra.mxu0 0.0
        %415 = vmatprep.mubr.f32.mxu0 0.0
        %416 = vmatmul.mubr.f32.gmra.mxu0 %v324
        %v417 = vpop.f32.mrf.mxu0
        %v418 = vadd.f32 %v349, %v417
        %v419 = vpop.f32.mrf.mxu0
        %420 = vmatprep.mubr.f32.mxu0 0.0
        %421 = vmatmul.mubr.f32.gmra.mxu0 %v325
        %v422 = vpop.f32.mrf.mxu0
        %v423 = vadd.f32 %v349, %v422
        %v424 = vpop.f32.mrf.mxu0
        %425 = vmatprep.mubr.f32.mxu0 0.0
        %426 = vmatmul.mubr.f32.gmra.mxu0 %v326
        %v427 = vpop.f32.mrf.mxu0
        %v428 = vadd.f32 %v349, %v427
        %v429 = vpop.f32.mrf.mxu0
        %430 = vmatprep.mubr.f32.mxu0 0.0
        %431 = vmatmul.mubr.f32.gmra.mxu0 %v327
        %v432 = vpop.f32.mrf.mxu0
        %v433 = vadd.f32 %v349, %v432
        %v434 = vpop.f32.mrf.mxu0
        %435 = vdwg.mxu0
        %v436 = vmul.f32 %v418, %v418
        %v437 = vmul.f32 %v423, %v423
        %v438 = vmul.f32 %v428, %v428
        %v439 = vmul.f32 %v433, %v433
        %v440 = vmul.f32 %v418, %v436
        %v441 = vmul.f32 %v423, %v437
        %v442 = vmul.f32 %v428, %v438
        %v443 = vmul.f32 %v433, %v439
        %v444 = vmul.f32 %v440, 0.044715
        %v445 = vmul.f32 %v441, 0.044715
        %v446 = vmul.f32 %v442, 0.044715
        %v447 = vmul.f32 %v443, 0.044715
        %v448 = vadd.f32 %v418, %v444
        %v449 = vadd.f32 %v423, %v445
        %v450 = vadd.f32 %v428, %v446
        %v451 = vadd.f32 %v433, %v447
        %v452 = vmul.f32 %v448, 0.7978846
        %v453 = vmul.f32 %v449, 0.7978846
        %v454 = vmul.f32 %v450, 0.7978846
        %v455 = vmul.f32 %v451, 0.7978846
        %v456 = vtanh.pop %v452
        %v457 = vtanh.pop %v453
        %v458 = vtanh.pop %v454
        %v459 = vtanh.pop %v455
        %v460 = vadd.f32 %v456, 1.0
        %v461 = vadd.f32 %v457, 1.0
        %v462 = vadd.f32 %v458, 1.0
        %v463 = vadd.f32 %v459, 1.0
        %v464 = vmul.f32 %v460, 0.5
        %v465 = vmul.f32 %v461, 0.5
        %v466 = vmul.f32 %v462, 0.5
        %v467 = vmul.f32 %v463, 0.5
        %v468 = vmul.f32 %v418, %v464
        %v469 = vmul.f32 %v423, %v465
        %v470 = vmul.f32 %v428, %v466
        %v471 = vmul.f32 %v433, %v467
        %v472 = vld [vmem:[%s288] sm:$0xff]
        %v473 = vld [vmem:[%s288 + $0x8] sm:$0xff]
        %v474 = vld [vmem:[%s288 + $0x10] sm:$0xff]
        %v475 = vld [vmem:[%s288 + $0x18] sm:$0xff]
        %v476 = vld [vmem:[%s288 + $0x20] sm:$0xff]
        %v477 = vld [vmem:[%s288 + $0x28] sm:$0xff]
        %v478 = vld [vmem:[%s288 + $0x30] sm:$0xff]
        %v479 = vld [vmem:[%s288 + $0x38] sm:$0xff]
        %v480 = vld [vmem:[%s288 + $0x40] sm:$0xff]
        %v481 = vld [vmem:[%s288 + $0x48] sm:$0xff]
        %v482 = vld [vmem:[%s288 + $0x50] sm:$0xff]
        %v483 = vld [vmem:[%s288 + $0x58] sm:$0xff]
        %v484 = vld [vmem:[%s288 + $0x60] sm:$0xff]
        %v485 = vld [vmem:[%s288 + $0x68] sm:$0xff]
        %v486 = vld [vmem:[%s288 + $0x70] sm:$0xff]
        %v487 = vld [vmem:[%s288 + $0x78] sm:$0xff]
        %488 = vmatprep.subr.mxu0 0.0
        %489 = vmatpush1.msra.mxu0 %v487
        %490 = vmatprep.subr.mxu0 0.0
        %491 = vmatpush1.msra.mxu0 %v486
        %492 = vmatprep.subr.mxu0 0.0
        %493 = vmatpush1.msra.mxu0 %v485
        %494 = vmatprep.subr.mxu0 0.0
        %495 = vmatpush1.msra.mxu0 %v484
        %496 = vmatprep.subr.mxu0 0.0
        %497 = vmatpush1.msra.mxu0 %v483
        %498 = vmatprep.subr.mxu0 0.0
        %499 = vmatpush1.msra.mxu0 %v482
        %500 = vmatprep.subr.mxu0 0.0
        %501 = vmatpush1.msra.mxu0 %v481
        %502 = vmatprep.subr.mxu0 0.0
        %503 = vmatpush1.msra.mxu0 %v480
        %504 = vmatprep.subr.mxu0 0.0
        %505 = vmatpush1.msra.mxu0 %v479
        %506 = vmatprep.subr.mxu0 0.0
        %507 = vmatpush1.msra.mxu0 %v478
        %508 = vmatprep.subr.mxu0 0.0
        %509 = vmatpush1.msra.mxu0 %v477
        %510 = vmatprep.subr.mxu0 0.0
        %511 = vmatpush1.msra.mxu0 %v476
        %512 = vmatprep.subr.mxu0 0.0
        %513 = vmatpush1.msra.mxu0 %v475
        %514 = vmatprep.subr.mxu0 0.0
        %515 = vmatpush1.msra.mxu0 %v474
        %516 = vmatprep.subr.mxu0 0.0
        %517 = vmatpush1.msra.mxu0 %v473
        %518 = vmatprep.subr.mxu0 0.0
        %519 = vmatpush1.msra.mxu0 %v472
        %520 = vmatprep.subr.mxu0 0.0
        %521 = vmatpush2.msra.mxu0 0.0
        %522 = vmatprep.subr.mxu0 0.0
        %523 = vmatpush2.msra.mxu0 0.0
        %524 = vmatprep.subr.mxu0 0.0
        %525 = vmatpush2.msra.mxu0 0.0
        %526 = vmatprep.subr.mxu0 0.0
        %527 = vmatpush2.msra.mxu0 0.0
        %528 = vmatprep.subr.mxu0 0.0
        %529 = vmatpush2.msra.mxu0 0.0
        %530 = vmatprep.subr.mxu0 0.0
        %531 = vmatpush2.msra.mxu0 0.0
        %532 = vmatprep.subr.mxu0 0.0
        %533 = vmatpush2.msra.mxu0 0.0
        %534 = vmatprep.subr.mxu0 0.0
        %535 = vmatpush2.msra.mxu0 0.0
        %536 = vmatprep.subr.mxu0 0.0
        %537 = vmatpush2.msra.mxu0 0.0
        %538 = vmatprep.subr.mxu0 0.0
        %539 = vmatpush2.msra.mxu0 0.0
        %540 = vmatprep.subr.mxu0 0.0
        %541 = vmatpush2.msra.mxu0 0.0
        %542 = vmatprep.subr.mxu0 0.0
        %543 = vmatpush2.msra.mxu0 0.0
        %544 = vmatprep.subr.mxu0 0.0
        %545 = vmatpush2.msra.mxu0 0.0
        %546 = vmatprep.subr.mxu0 0.0
        %547 = vmatpush2.msra.mxu0 0.0
        %548 = vmatprep.subr.mxu0 0.0
        %549 = vmatpush2.msra.mxu0 0.0
        %550 = vmatprep.subr.mxu0 0.0
        %551 = vmatpush2.msra.mxu0 0.0
        %552 = vmatprep.mubr.f32.mxu0 0.0
        %553 = vmatmul.mubr.f32.gmra.mxu0 %v468
        %v554 = vpop.f32.mrf.mxu0
        %v555 = vadd.f32 0.0, %v554
        %v556 = vpop.f32.mrf.mxu0
        %557 = vmatprep.mubr.f32.mxu0 0.0
        %558 = vmatmul.mubr.f32.gmra.mxu0 %v469
        %v559 = vpop.f32.mrf.mxu0
        %v560 = vadd.f32 0.0, %v559
        %v561 = vpop.f32.mrf.mxu0
        %562 = vmatprep.mubr.f32.mxu0 0.0
        %563 = vmatmul.mubr.f32.gmra.mxu0 %v470
        %v564 = vpop.f32.mrf.mxu0
        %v565 = vadd.f32 0.0, %v564
        %v566 = vpop.f32.mrf.mxu0
        %567 = vmatprep.mubr.f32.mxu0 0.0
        %568 = vmatmul.mubr.f32.gmra.mxu0 %v471
        %v569 = vpop.f32.mrf.mxu0
        %v570 = vadd.f32 0.0, %v569
        %v571 = vpop.f32.mrf.mxu0
        %572 = vdwg.mxu0
        %p573 = scmp.eq.s32.totalorder %s26, 0
        // Predicated region
        $region53: #{tpu_custom_call.1} parent=39 // pred_check
          %p574 = pneg %p573
        $region54: #{tpu_custom_call.1} parent=39 // pred_check_branch
          %576 = sbr.rel (%p574) target = $region56
        $region55: #{tpu_custom_call.1} parent=39 // pred_region
          %577 = vst [vmem:[#allocation2] sm:$0xff] 0.0
          %578 = vst [vmem:[#allocation2 + $0x8] sm:$0xff] 0.0
          %579 = vst [vmem:[#allocation2 + $0x10] sm:$0xff] 0.0
          %580 = vst [vmem:[#allocation2 + $0x18] sm:$0xff] 0.0
        $region56: #{tpu_custom_call.1} parent=39 // pred_fallthru
          _
        %v581 = vld [vmem:[#allocation2] sm:$0xff]
        %v582 = vld [vmem:[#allocation2 + $0x8] sm:$0xff]
        %v583 = vld [vmem:[#allocation2 + $0x10] sm:$0xff]
        %v584 = vld [vmem:[#allocation2 + $0x18] sm:$0xff]
        %v585 = vadd.f32 %v581, %v555
        %v586 = vadd.f32 %v582, %v560
        %v587 = vadd.f32 %v583, %v565
        %v588 = vadd.f32 %v584, %v570
        %589 = vst [vmem:[#allocation2] sm:$0xff] %v585
        %590 = vst [vmem:[#allocation2 + $0x8] sm:$0xff] %v586
        %591 = vst [vmem:[#allocation2 + $0x10] sm:$0xff] %v587
        %592 = vst [vmem:[#allocation2 + $0x18] sm:$0xff] %v588
        %p593 = scmp.eq.s32.totalorder %s26, 1
        // Predicated region
        $region57: #{tpu_custom_call.1} parent=39 // pred_check
          %p594 = pneg %p593
        $region58: #{tpu_custom_call.1} parent=39 // pred_check_branch
          %596 = sbr.rel (%p594) target = $region60
        $region59: #{tpu_custom_call.1} parent=39 // pred_region
          %v597 = vld [vmem:[#allocation2] sm:$0xff]
          %v598 = vld [vmem:[#allocation2 + $0x8] sm:$0xff]
          %v599 = vld [vmem:[#allocation2 + $0x10] sm:$0xff]
          %v600 = vld [vmem:[#allocation2 + $0x18] sm:$0xff]
          %v601 = vld [vmem:[%s4] sm:$0x1]
          %v603 = vlaneseq
          %v604 = vshrl.u32 %v603, 7
          %v605 = vsub.s32 0, %v604
          %v606 = vrot.slane %v601, %v605
          %v608 = vadd.f32 %v597, %v606
          %v609 = vadd.f32 %v598, %v606
          %v610 = vadd.f32 %v599, %v606
          %v611 = vadd.f32 %v600, %v606
          %v612 = vadd.f32 %v608, %v324
          %v613 = vadd.f32 %v609, %v325
          %v614 = vadd.f32 %v610, %v326
          %v615 = vadd.f32 %v611, %v327
          %616 = vst [vmem:[#allocation9] sm:$0xff] %v612
          %617 = vst [vmem:[#allocation9 + $0x8] sm:$0xff] %v613
          %618 = vst [vmem:[#allocation9 + $0x10] sm:$0xff] %v614
          %619 = vst [vmem:[#allocation9 + $0x18] sm:$0xff] %v615
        $region60: #{tpu_custom_call.1} parent=39 // pred_fallthru
          _
        // Predicated region
        $region61: #{tpu_custom_call.1} parent=39 // pred_check
          %p620 = pneg %p176
        $region62: #{tpu_custom_call.1} parent=39 // pred_check_branch
          %622 = sbr.rel (%p620) target = $region64
        $region63: #{tpu_custom_call.1} parent=39 // pred_region
          %s623 = smul.u32 4, %s25
          %s625 = ssub.s32 512, 512
          %626 = vsyncadd [#allocation5], %s625
          %s627 = smul.addr %s623, 128
          %s628 = scalar_lea.hbm %s5, %s627
          %s629 = sshll.u32 [#allocation9], 4
          %s630 = int_to_ptr.vmem [resolvable:$true] %s629
          %635 = dma.vmem_to_hbm [thread:$0]  %s630, 512, %s628, [#allocation5], 128, 128, 8
        $region64: #{tpu_custom_call.1} parent=39 // pred_fallthru
          _
        // Predicated region
        $region65: #{tpu_custom_call.1} parent=39 // pred_check
          %p636 = pneg %p176
        $region66: #{tpu_custom_call.1} parent=39 // pred_check_branch
          %638 = sbr.rel (%p636) target = $region68
        $region67: #{tpu_custom_call.1} parent=39 // pred_region
          %639 = dma.done [#allocation5], 512
        $region68: #{tpu_custom_call.1} parent=39 // pred_fallthru
          _
      $region40: #{tpu_custom_call.1} parent=5 // pred_fallthru
        _
      %p640 = scmp.le.s32.totalorder 2, %s16
      // Predicated region
      $region69: #{tpu_custom_call.1} parent=5 // pred_check
        %p641 = pneg %p640
      $region70: #{tpu_custom_call.1} parent=5 // pred_check_branch
        %643 = sbr.rel (%p641) target = $region72
      $region71: #{tpu_custom_call.1} parent=5 // pred_region
        %s644 = ssub.s32 %s16, 2
      $region72: #{tpu_custom_call.1} parent=5 // pred_fallthru
        _
    $region6: #{tpu_custom_call.1} parent=1 // loop_footer
      %s20 = sadd.s32 1, %s16
    $region7: #{tpu_custom_call.1} parent=1 // loop_footer_branch
      %15 = sbr.rel target = $region3
    $region8: #{tpu_custom_call.1} parent=1 // loop_exit
      _
    %645 = vsyncpa [#allocation4], 1
    %s646 = scalar_lea.sflag [#allocation4], 1
    %647 = vsyncpa %s646, 1
    %648 = vsyncpa [#allocation7], 1
    %s649 = scalar_lea.sflag [#allocation7], 1
    %650 = vsyncpa %s649, 1
    %651 = vsyncpa [#allocation5], 1
    %s652 = scalar_lea.sflag [#allocation5], 1
    %653 = vsyncpa %s652, 1

</llo_original>
